<compile_context>
chip_gen: v7x
topology: tpu7x:2x2x1
jax: 0.10.0
libtpu: 0.0.40
codegen_flags: <defaults>
</compile_context>

<pallas_src>
import functools

import jax
import jax.numpy as jnp
from jax import lax
from jax.experimental import pallas as pl
from jax.experimental.pallas import tpu as pltpu

# ---------------- model hyper-parameters (scaled-down, same structure) -------
FILTER_SIZES = (2, 3, 4)      # module: (2, 3, 4)
N_TAPS = sum(FILTER_SIZES)    # 9
N_BRANCH = len(FILTER_SIZES)  # 3
HIDDEN = 32                   # module: 768
NUM_FILTERS = 16              # module: 256
NUM_CLASSES = 1               # module: 1
BATCH = 2
SEQ = 8
LANE = 128                    # vreg lane width


# ---------------- Pallas kernel ----------------------------------------------
def bertcnn_kernel(x_ref, wall_ref, ball_ref, wfc_ref, bfc_ref, o_ref, *,
                   fuse_taps):
    """bf16 MXU matmul(s) + roll/mask conv combine + ReLU/max-pool + VPU FC + sigmoid."""
    tb, L, H = x_ref.shape
    Fp = wall_ref.shape[1] // N_TAPS
    R = tb * L

    # In-kernel bf16 cast (single f32 HBM read; no bf16 copy written to HBM).
    x2 = x_ref[...].reshape(R, H).astype(jnp.bfloat16)

    if fuse_taps:
        # ONE wide 2-D MXU matmul over all 9 taps: (R, H) @ (H, 9*Fp) -> f32.
        y2 = jnp.dot(x2, wall_ref[...], preferred_element_type=jnp.float32)

        def tap(t):                                    # 128-aligned lane slice
            return y2[:, t * Fp:(t + 1) * Fp]
    else:
        # VMEM-bounded fallback: one narrow (H, Fp) matmul per tap; never
        # materialises the (R, 9*Fp) f32 slab (needed on v7x at production).
        def tap(t):
            return jnp.dot(x2, wall_ref[:, t * Fp:(t + 1) * Fp],
                           preferred_element_type=jnp.float32)

    # Sequence-row iota, hoisted out of the branch loop (JAX does not CSE
    # broadcasts).  Used to mask the wrapped tail rows before the max-pool.
    lidx = lax.broadcasted_iota(jnp.int32, (1, L, Fp), 1)

    logits = None
    t0 = 0
    for bi, k in enumerate(FILTER_SIZES):
        # conv[b, l] = sum_i x[b, l+i] @ w_k[i]: align tap i with an XLU
        # sublane rotation (shift -i) and add on the VPU.  Rows whose window
        # crosses the batch/tile boundary pick up wrapped garbage and are
        # masked to 0 (the post-ReLU minimum) before the max-pool.
        acc = tap(t0)
        for i in range(1, k):
            acc = acc + pltpu.roll(tap(t0 + i), shift=(R - i) % R, axis=0)
        a = acc.reshape(tb, L, Fp) + ball_ref[bi:bi + 1, :]        # bias (f32)
        a = jnp.maximum(a, 0.0)                                    # ReLU
        a = jnp.where(lidx < (L - k + 1), a, 0.0)                  # mask tail rows
        fk = jnp.max(a, axis=1)                                    # max-pool -> (tb, Fp)
        # FC with NUM_CLASSES == 1: VPU multiply + lane reduction (no MXU dot
        # with a single output column).  Padded lanes contribute exactly zero.
        contrib = jnp.sum(fk * wfc_ref[bi:bi + 1, :], axis=-1, keepdims=True)
        logits = contrib if logits is None else logits + contrib
        t0 += k

    o_ref[...] = jax.nn.sigmoid(logits + bfc_ref[...])             # (tb, C)


# ---------------- VMEM-aware tiling / mode selection -------------------------
def _vmem_capacity_bytes():
    try:
        return int(pltpu.get_tpu_info().vmem_capacity_bytes)
    except Exception:                       # conservative default: v7x per-core
        return 64 << 20


def _tile_and_mode(B, L, H, Fp):
    """Pick (batch tile, fused-matmul?, vmem_limit_bytes) from the chip's VMEM."""
    vmem_cap = _vmem_capacity_bytes()
    budget = int(vmem_cap * 0.7)            # headroom for transients / regalloc

    fixed = 2 * H * N_TAPS * Fp * 2 + (2 * N_BRANCH * Fp + 1) * 4   # weights (2-deep) + bias/fc
    act = 2 * L * H * 4                     # f32 activation tile, double-buffered
    per_b_fused = act + (N_TAPS + 3) * L * Fp * 4   # wide y slab + branch transients
    per_b_tap = act + 3 * L * Fp * 4                # per-tap fallback transients

    # Batch-tile candidates: full batch when small (a sub-8 tile would break
    # the (8,128) sublane rule on the (TB, 1) output block); otherwise
    # multiples of 8 capped at B//2 so the "parallel" batch grid has >= 2
    # steps and both v7x TensorCores get work (no-op on v5e/v6e).
    if B <= 8 or B % 8 != 0:
        cands = [B]
    else:
        cands = [t for t in (32, 24, 16, 8)
                 if t <= max(8, B // 2) and B % t == 0] or [8]

    vmem_limit = int(vmem_cap * 0.9)        # raise the 16/32 MiB scoped default
    for tb in cands:                        # prefer the single wide matmul
        if fixed + tb * per_b_fused <= budget:
            return tb, True, vmem_limit
    for tb in cands:                        # fall back to per-tap accumulation
        if fixed + tb * per_b_tap <= budget:
            return tb, False, vmem_limit
    return cands[-1], False, vmem_limit


# ---------------- wrapper -----------------------------------------------------
@functools.partial(jax.jit, static_argnames=("fuse_taps",))
def bertcnn_forward(encoder_out, params, *, fuse_taps=None):
    B, L, H = encoder_out.shape
    F, C = NUM_FILTERS, NUM_CLASSES
    assert C == 1   # VPU-FC path assumes a single output class (as in the module)

    # Pad each tap's filter block to a whole number of 128-lane vregs so all
    # in-kernel column slices are lane-aligned (a no-op at production F=256).
    Fp = ((F + LANE - 1) // LANE) * LANE

    def pad_f(a):   # zero-pad the trailing (filter) dim F -> Fp
        return a if Fp == F else jnp.pad(a, [(0, 0)] * (a.ndim - 1) + [(0, Fp - F)])

    # Weight prep (tiny; in production this is folded once at weight-load time).
    # Tap order: [w2[0], w2[1], w3[0..2], w4[0..3]].
    w_all = jnp.concatenate(
        [pad_f(params[f"w{k}"][i]) for k in FILTER_SIZES for i in range(k)],
        axis=-1).astype(jnp.bfloat16)                                   # (H, 9*Fp)
    b_all = pad_f(jnp.concatenate([params[f"b{k}"] for k in FILTER_SIZES],
                                  axis=0))                              # (3, Fp)
    wfc_r = pad_f(params["wfc"].reshape(N_BRANCH, F))                   # (3, Fp), valid since C == 1

    TB, fuse_auto, vmem_limit = _tile_and_mode(B, L, H, Fp)
    fuse = fuse_auto if fuse_taps is None else fuse_taps
    assert B % TB == 0

    cost = pl.CostEstimate(
        flops=(2 * B * L * H * N_TAPS * Fp            # conv matmul(s)
               + B * L * Fp * (N_TAPS - N_BRANCH)     # shifted VPU adds
               + 2 * B * N_BRANCH * Fp),              # FC lane reductions
        transcendentals=B * C,
        bytes_accessed=(encoder_out.size * 4 + w_all.size * 2
                        + (b_all.size + wfc_r.size + C) * 4 + B * C * 4))

    return pl.pallas_call(
        functools.partial(bertcnn_kernel, fuse_taps=fuse),
        out_shape=jax.ShapeDtypeStruct((B, C), jnp.float32),
        grid=(B // TB,),
        in_specs=[
            pl.BlockSpec((TB, L, H), lambda b: (b, 0, 0)),          # activations (batch-tiled)
            pl.BlockSpec((H, N_TAPS * Fp), lambda b: (0, 0)),       # fused conv weights (resident)
            pl.BlockSpec((N_BRANCH, Fp), lambda b: (0, 0)),         # fused conv biases
            pl.BlockSpec((N_BRANCH, Fp), lambda b: (0, 0)),         # fc weight rows (per branch)
            pl.BlockSpec((1, C), lambda b: (0, 0)),                 # fc bias
        ],
        out_specs=pl.BlockSpec((TB, C), lambda b: (b, 0)),
        compiler_params=pltpu.CompilerParams(
            dimension_semantics=("parallel",),
            vmem_limit_bytes=vmem_limit),
        cost_estimate=cost,
    )(encoder_out, w_all, b_all, wfc_r, params["bfc"])


# ---------------- pure-JAX reference (PyTorch semantics) ----------------------
def bertcnn_reference(x, params):
    # bf16-quantized matmul operands to match the kernel's MXU inputs,
    # f32 accumulation and epilogue.
    xq = x.astype(jnp.bfloat16).astype(jnp.float32)
    feats = []
    for k in FILTER_SIZES:
        w = params[f"w{k}"].astype(jnp.bfloat16).astype(jnp.float32)
        Lv = xq.shape[1] - k + 1
        acc = jnp.zeros((xq.shape[0], Lv, NUM_FILTERS), jnp.float32)
        for i in range(k):
            acc = acc + jnp.einsum("blh,hf->blf", xq[:, i:i + Lv, :], w[i],
                                   preferred_element_type=jnp.float32)
        acc = jax.nn.relu(acc + params[f"b{k}"])
        feats.append(jnp.max(acc, axis=1))
    feat = jnp.concatenate(feats, axis=1)
    return jax.nn.sigmoid(feat @ params["wfc"] + params["bfc"])


# ---------------- deterministic parameter init -------------------------------
def init_params(key):
    ks = jax.random.split(key, 8)
    p = {}
    for idx, k in enumerate(FILTER_SIZES):
        p[f"w{k}"] = 0.02 * jax.random.normal(ks[idx], (k, HIDDEN, NUM_FILTERS),
                                              jnp.float32)
        p[f"b{k}"] = 0.01 * jax.random.normal(ks[idx + 3], (1, NUM_FILTERS),
                                              jnp.float32)
    p["wfc"] = 0.02 * jax.random.normal(
        ks[6], (NUM_FILTERS * len(FILTER_SIZES), NUM_CLASSES), jnp.float32)
    p["bfc"] = 0.01 * jax.random.normal(ks[7], (1, NUM_CLASSES), jnp.float32)
    return p


if __name__ == "__main__":
    root = jax.random.PRNGKey(0)
    k_x, k_p = jax.random.split(root)

    # Synthetic stand-in for the BERT encoder output outputs[0]: (B, L, H).
    encoder_out = jax.random.normal(k_x, (BATCH, SEQ, HIDDEN), jnp.float32)
    params = init_params(k_p)

    ref = bertcnn_reference(encoder_out, params)

    # Auto mode (single wide 2-D matmul at these shapes).
    out = jax.block_until_ready(bertcnn_forward(encoder_out, params))
    assert out.shape == (BATCH, NUM_CLASSES)
    assert jnp.allclose(out, ref, atol=1e-4, rtol=1e-4), (out, ref)

    # Also exercise the VMEM-bounded per-tap path (used at production shapes on v7x).
    out2 = jax.block_until_ready(bertcnn_forward(encoder_out, params,
                                                 fuse_taps=False))
    assert jnp.allclose(out2, ref, atol=1e-4, rtol=1e-4), (out2, ref)

    print("KERNEL_OK")
</pallas_src>

<mosaic_0001>
module attributes {stable_mosaic.version = 11 : i64} {
  func.func @bertcnn_kernel(%arg0: i32, %arg1: memref<2x8x32xf32, #tpu.memory_space<vmem>>, %arg2: memref<32x1152xbf16, #tpu.memory_space<vmem>>, %arg3: memref<3x128xf32, #tpu.memory_space<vmem>>, %arg4: memref<3x128xf32, #tpu.memory_space<vmem>>, %arg5: memref<1x1xf32, #tpu.memory_space<vmem>>, %arg6: memref<2x1xf32, #tpu.memory_space<vmem>>) attributes {dimension_semantics = [#tpu.dimension_semantics<parallel>], iteration_bounds = array<i64: 1>, scalar_prefetch = 0 : i64, scratch_operands = 0 : i64, tpu.core_type = #tpu.core_type<tc>, window_params = [{transform_indices = @transform_0, window_bounds = array<i64: 2, 8, 32>}, {pipeline_mode = #tpu.pipeline_mode<synchronous>, transform_indices = @transform_1, window_bounds = array<i64: 32, 1152>}, {pipeline_mode = #tpu.pipeline_mode<synchronous>, transform_indices = @transform_2, window_bounds = array<i64: 3, 128>}, {pipeline_mode = #tpu.pipeline_mode<synchronous>, transform_indices = @transform_3, window_bounds = array<i64: 3, 128>}, {pipeline_mode = #tpu.pipeline_mode<synchronous>, transform_indices = @transform_4, window_bounds = array<i64: 1, 1>}, {transform_indices = @transform_5, window_bounds = array<i64: 2, 1>}]} {
    %c0 = arith.constant 0 : index
    %c0_0 = arith.constant 0 : index
    %c0_1 = arith.constant 0 : index
    %0 = vector.load %arg1[%c0, %c0_0, %c0_1] : memref<2x8x32xf32, #tpu.memory_space<vmem>>, vector<2x8x32xf32>
    %1 = vector.shape_cast %0 : vector<2x8x32xf32> to vector<16x32xf32>
    %2 = arith.truncf %1 : vector<16x32xf32> to vector<16x32xbf16>
    %c0_2 = arith.constant 0 : index
    %c0_3 = arith.constant 0 : index
    %3 = vector.load %arg2[%c0_2, %c0_3] : memref<32x1152xbf16, #tpu.memory_space<vmem>>, vector<32x1152xbf16>
    %cst = arith.constant dense<0.000000e+00> : vector<16x1152xf32>
    %4 = tpu.matmul %2, %3, %cst {dimension_numbers = #tpu.dot_dimension_numbers<[1], [0], [0], [1], [0, 0, 1, 1], [], []>} : vector<16x32xbf16>, vector<32x1152xbf16>, vector<16x1152xf32> -> vector<16x1152xf32>
    %5 = tpu.iota {dimensions = array<i32: 1>} : vector<1x8x128xi32>
    %6 = vector.extract_strided_slice %4 {offsets = [0, 0], sizes = [16, 128], strides = [1, 1]} : vector<16x1152xf32> to vector<16x128xf32>
    %7 = vector.extract_strided_slice %4 {offsets = [0, 128], sizes = [16, 128], strides = [1, 1]} : vector<16x1152xf32> to vector<16x128xf32>
    %c15_i32 = arith.constant 15 : i32
    %8 = tpu.dynamic_rotate %7 by %c15_i32 dim 0 : vector<16x128xf32>, i32 -> vector<16x128xf32>
    %9 = arith.addf %6, %8 : vector<16x128xf32>
    %10 = vector.shape_cast %9 : vector<16x128xf32> to vector<2x8x128xf32>
    %c0_4 = arith.constant 0 : index
    %c0_5 = arith.constant 0 : index
    %11 = vector.load %arg3[%c0_4, %c0_5] : memref<3x128xf32, #tpu.memory_space<vmem>>, vector<1x128xf32>
    %12 = vector.shape_cast %11 : vector<1x128xf32> to vector<1x1x128xf32>
    %13 = vector.broadcast %12 : vector<1x1x128xf32> to vector<2x8x128xf32>
    %14 = arith.addf %10, %13 : vector<2x8x128xf32>
    %cst_6 = arith.constant 0.000000e+00 : f32
    %15 = vector.broadcast %cst_6 : f32 to vector<2x8x128xf32>
    %16 = arith.maximumf %14, %15 : vector<2x8x128xf32>
    %c7_i32 = arith.constant 7 : i32
    %17 = vector.broadcast %c7_i32 : i32 to vector<1x8x128xi32>
    %18 = arith.cmpi slt, %5, %17 : vector<1x8x128xi32>
    %cst_7 = arith.constant 0.000000e+00 : f32
    %19 = vector.shape_cast %18 : vector<1x8x128xi1> to vector<1x8x128xi1>
    %20 = vector.broadcast %19 : vector<1x8x128xi1> to vector<2x8x128xi1>
    %21 = vector.broadcast %cst_7 : f32 to vector<2x8x128xf32>
    %22 = arith.select %20, %16, %21 : vector<2x8x128xi1>, vector<2x8x128xf32>
    %cst_8 = arith.constant dense<0xFF800000> : vector<2x128xf32>
    %23 = vector.multi_reduction <maximumf>, %22, %cst_8 [1] : vector<2x8x128xf32> to vector<2x128xf32>
    %c0_9 = arith.constant 0 : index
    %c0_10 = arith.constant 0 : index
    %24 = vector.load %arg4[%c0_9, %c0_10] : memref<3x128xf32, #tpu.memory_space<vmem>>, vector<1x128xf32>
    %25 = vector.broadcast %24 : vector<1x128xf32> to vector<2x128xf32>
    %26 = arith.mulf %23, %25 : vector<2x128xf32>
    %cst_11 = arith.constant dense<0.000000e+00> : vector<2xf32>
    %27 = vector.multi_reduction <add>, %26, %cst_11 [1] : vector<2x128xf32> to vector<2xf32>
    %28 = vector.shape_cast %27 : vector<2xf32> to vector<2x1xf32>
    %29 = vector.extract_strided_slice %4 {offsets = [0, 256], sizes = [16, 128], strides = [1, 1]} : vector<16x1152xf32> to vector<16x128xf32>
    %30 = vector.extract_strided_slice %4 {offsets = [0, 384], sizes = [16, 128], strides = [1, 1]} : vector<16x1152xf32> to vector<16x128xf32>
    %c15_i32_12 = arith.constant 15 : i32
    %31 = tpu.dynamic_rotate %30 by %c15_i32_12 dim 0 : vector<16x128xf32>, i32 -> vector<16x128xf32>
    %32 = arith.addf %29, %31 : vector<16x128xf32>
    %33 = vector.extract_strided_slice %4 {offsets = [0, 512], sizes = [16, 128], strides = [1, 1]} : vector<16x1152xf32> to vector<16x128xf32>
    %c14_i32 = arith.constant 14 : i32
    %34 = tpu.dynamic_rotate %33 by %c14_i32 dim 0 : vector<16x128xf32>, i32 -> vector<16x128xf32>
    %35 = arith.addf %32, %34 : vector<16x128xf32>
    %36 = vector.shape_cast %35 : vector<16x128xf32> to vector<2x8x128xf32>
    %c1 = arith.constant 1 : index
    %c0_13 = arith.constant 0 : index
    %37 = vector.load %arg3[%c1, %c0_13] : memref<3x128xf32, #tpu.memory_space<vmem>>, vector<1x128xf32>
    %38 = vector.shape_cast %37 : vector<1x128xf32> to vector<1x1x128xf32>
    %39 = vector.broadcast %38 : vector<1x1x128xf32> to vector<2x8x128xf32>
    %40 = arith.addf %36, %39 : vector<2x8x128xf32>
    %cst_14 = arith.constant 0.000000e+00 : f32
    %41 = vector.broadcast %cst_14 : f32 to vector<2x8x128xf32>
    %42 = arith.maximumf %40, %41 : vector<2x8x128xf32>
    %c6_i32 = arith.constant 6 : i32
    %43 = vector.broadcast %c6_i32 : i32 to vector<1x8x128xi32>
    %44 = arith.cmpi slt, %5, %43 : vector<1x8x128xi32>
    %cst_15 = arith.constant 0.000000e+00 : f32
    %45 = vector.shape_cast %44 : vector<1x8x128xi1> to vector<1x8x128xi1>
    %46 = vector.broadcast %45 : vector<1x8x128xi1> to vector<2x8x128xi1>
    %47 = vector.broadcast %cst_15 : f32 to vector<2x8x128xf32>
    %48 = arith.select %46, %42, %47 : vector<2x8x128xi1>, vector<2x8x128xf32>
    %cst_16 = arith.constant dense<0xFF800000> : vector<2x128xf32>
    %49 = vector.multi_reduction <maximumf>, %48, %cst_16 [1] : vector<2x8x128xf32> to vector<2x128xf32>
    %c1_17 = arith.constant 1 : index
    %c0_18 = arith.constant 0 : index
    %50 = vector.load %arg4[%c1_17, %c0_18] : memref<3x128xf32, #tpu.memory_space<vmem>>, vector<1x128xf32>
    %51 = vector.broadcast %50 : vector<1x128xf32> to vector<2x128xf32>
    %52 = arith.mulf %49, %51 : vector<2x128xf32>
    %cst_19 = arith.constant dense<0.000000e+00> : vector<2xf32>
    %53 = vector.multi_reduction <add>, %52, %cst_19 [1] : vector<2x128xf32> to vector<2xf32>
    %54 = vector.shape_cast %53 : vector<2xf32> to vector<2x1xf32>
    %55 = arith.addf %28, %54 : vector<2x1xf32>
    %56 = vector.extract_strided_slice %4 {offsets = [0, 640], sizes = [16, 128], strides = [1, 1]} : vector<16x1152xf32> to vector<16x128xf32>
    %57 = vector.extract_strided_slice %4 {offsets = [0, 768], sizes = [16, 128], strides = [1, 1]} : vector<16x1152xf32> to vector<16x128xf32>
    %c15_i32_20 = arith.constant 15 : i32
    %58 = tpu.dynamic_rotate %57 by %c15_i32_20 dim 0 : vector<16x128xf32>, i32 -> vector<16x128xf32>
    %59 = arith.addf %56, %58 : vector<16x128xf32>
    %60 = vector.extract_strided_slice %4 {offsets = [0, 896], sizes = [16, 128], strides = [1, 1]} : vector<16x1152xf32> to vector<16x128xf32>
    %c14_i32_21 = arith.constant 14 : i32
    %61 = tpu.dynamic_rotate %60 by %c14_i32_21 dim 0 : vector<16x128xf32>, i32 -> vector<16x128xf32>
    %62 = arith.addf %59, %61 : vector<16x128xf32>
    %63 = vector.extract_strided_slice %4 {offsets = [0, 1024], sizes = [16, 128], strides = [1, 1]} : vector<16x1152xf32> to vector<16x128xf32>
    %c13_i32 = arith.constant 13 : i32
    %64 = tpu.dynamic_rotate %63 by %c13_i32 dim 0 : vector<16x128xf32>, i32 -> vector<16x128xf32>
    %65 = arith.addf %62, %64 : vector<16x128xf32>
    %66 = vector.shape_cast %65 : vector<16x128xf32> to vector<2x8x128xf32>
    %c2 = arith.constant 2 : index
    %c0_22 = arith.constant 0 : index
    %67 = vector.load %arg3[%c2, %c0_22] : memref<3x128xf32, #tpu.memory_space<vmem>>, vector<1x128xf32>
    %68 = vector.shape_cast %67 : vector<1x128xf32> to vector<1x1x128xf32>
    %69 = vector.broadcast %68 : vector<1x1x128xf32> to vector<2x8x128xf32>
    %70 = arith.addf %66, %69 : vector<2x8x128xf32>
    %cst_23 = arith.constant 0.000000e+00 : f32
    %71 = vector.broadcast %cst_23 : f32 to vector<2x8x128xf32>
    %72 = arith.maximumf %70, %71 : vector<2x8x128xf32>
    %c5_i32 = arith.constant 5 : i32
    %73 = vector.broadcast %c5_i32 : i32 to vector<1x8x128xi32>
    %74 = arith.cmpi slt, %5, %73 : vector<1x8x128xi32>
    %cst_24 = arith.constant 0.000000e+00 : f32
    %75 = vector.shape_cast %74 : vector<1x8x128xi1> to vector<1x8x128xi1>
    %76 = vector.broadcast %75 : vector<1x8x128xi1> to vector<2x8x128xi1>
    %77 = vector.broadcast %cst_24 : f32 to vector<2x8x128xf32>
    %78 = arith.select %76, %72, %77 : vector<2x8x128xi1>, vector<2x8x128xf32>
    %cst_25 = arith.constant dense<0xFF800000> : vector<2x128xf32>
    %79 = vector.multi_reduction <maximumf>, %78, %cst_25 [1] : vector<2x8x128xf32> to vector<2x128xf32>
    %c2_26 = arith.constant 2 : index
    %c0_27 = arith.constant 0 : index
    %80 = vector.load %arg4[%c2_26, %c0_27] : memref<3x128xf32, #tpu.memory_space<vmem>>, vector<1x128xf32>
    %81 = vector.broadcast %80 : vector<1x128xf32> to vector<2x128xf32>
    %82 = arith.mulf %79, %81 : vector<2x128xf32>
    %cst_28 = arith.constant dense<0.000000e+00> : vector<2xf32>
    %83 = vector.multi_reduction <add>, %82, %cst_28 [1] : vector<2x128xf32> to vector<2xf32>
    %84 = vector.shape_cast %83 : vector<2xf32> to vector<2x1xf32>
    %85 = arith.addf %55, %84 : vector<2x1xf32>
    %c0_29 = arith.constant 0 : index
    %c0_30 = arith.constant 0 : index
    %86 = vector.load %arg5[%c0_29, %c0_30] : memref<1x1xf32, #tpu.memory_space<vmem>>, vector<1x1xf32>
    %87 = vector.broadcast %86 : vector<1x1xf32> to vector<2x1xf32>
    %88 = arith.addf %85, %87 : vector<2x1xf32>
    %89 = arith.negf %88 : vector<2x1xf32>
    %90 = math.exp %89 : vector<2x1xf32>
    %cst_31 = arith.constant 1.000000e+00 : f32
    %91 = vector.broadcast %cst_31 : f32 to vector<2x1xf32>
    %92 = arith.addf %91, %90 : vector<2x1xf32>
    %93 = arith.divf %91, %92 : vector<2x1xf32>
    %c0_32 = arith.constant 0 : index
    %c0_33 = arith.constant 0 : index
    %94 = vector.load %arg6[%c0_32, %c0_33] : memref<2x1xf32, #tpu.memory_space<vmem>>, vector<2x1xf32>
    tpu.vector_store %arg6[%c0_32, %c0_33], %93 {strides = array<i32>} : memref<2x1xf32, #tpu.memory_space<vmem>>, vector<2x1xf32>,
    return
  }
  func.func @transform_0(%arg0: i32) -> (i32, i32, i32) {
    %c0_i32 = arith.constant 0 : i32
    %c0_i32_0 = arith.constant 0 : i32
    %c0_i32_1 = arith.constant 0 : i32
    return %arg0, %c0_i32, %c0_i32_0 : i32, i32, i32
  }
  func.func @transform_1(%arg0: i32) -> (i32, i32) {
    %c0_i32 = arith.constant 0 : i32
    %c0_i32_0 = arith.constant 0 : i32
    %c0_i32_1 = arith.constant 0 : i32
    return %c0_i32, %c0_i32_0 : i32, i32
  }
  func.func @transform_2(%arg0: i32) -> (i32, i32) {
    %c0_i32 = arith.constant 0 : i32
    %c0_i32_0 = arith.constant 0 : i32
    %c0_i32_1 = arith.constant 0 : i32
    return %c0_i32, %c0_i32_0 : i32, i32
  }
  func.func @transform_3(%arg0: i32) -> (i32, i32) {
    %c0_i32 = arith.constant 0 : i32
    %c0_i32_0 = arith.constant 0 : i32
    %c0_i32_1 = arith.constant 0 : i32
    return %c0_i32, %c0_i32_0 : i32, i32
  }
  func.func @transform_4(%arg0: i32) -> (i32, i32) {
    %c0_i32 = arith.constant 0 : i32
    %c0_i32_0 = arith.constant 0 : i32
    %c0_i32_1 = arith.constant 0 : i32
    return %c0_i32, %c0_i32_0 : i32, i32
  }
  func.func @transform_5(%arg0: i32) -> (i32, i32) {
    %c0_i32 = arith.constant 0 : i32
    %c0_i32_0 = arith.constant 0 : i32
    return %arg0, %c0_i32 : i32, i32
  }
}

</mosaic_0001>

<llo_original>
// kernel: bertcnn_forward.1
$region0: #{bertcnn_forward.1}
  #allocation0 [shape = 'u32[]', space=smem, size = 0x4, offset = 0x4, fixed_abs, tag = 'smem constant byte address 0x4 - core index']
  #allocation1 [shape = 'u32[144,128]{1,0:T(1,128)}', space=vmem, size = 0x12000, scoped, tag = 'internal scratch']
  #allocation2 [shape = 'f32[1,1]{1,0:T(1,128)S(1)}', space=vmem, size = 0x200, scoped, tag = 'scoped memory for bertcnn_forward.1']
  %s0 = inlined_call_operand.vmem [shape: f32[2,8,32], index: 0, kind: input, shape index: {}]
  %s1 = inlined_call_operand.vmem [shape: bf16[32,1152], index: 1, kind: input, shape index: {}]
  %s2 = inlined_call_operand.vmem [shape: f32[3,128], index: 2, kind: input, shape index: {}]
  %s3 = inlined_call_operand.vmem [shape: f32[3,128], index: 3, kind: input, shape index: {}]
  %s4 = inlined_call_operand.<no memory space> [shape: f32[1,1], index: 4, kind: input, shape index: {}]
  %s5 = inlined_call_operand.vmem [shape: f32[2,1], index: 5, kind: output, shape index: {}]
  %s6 = sld [smem:[#allocation0]]
  $region30: #{bertcnn_forward.1} parent=0
    _
  %s8 = ssub.s32 1, %s6
  %s9 = scalar_select 0, %s8, %s6
  %v10 = vstv %s4
  %11 = vst [vmem:[#allocation2] sm:$0x1] %v10
  // Predicated region
  $region2: #{bertcnn_forward.1} parent=0 // pred_check
    _
  $region3: #{bertcnn_forward.1} parent=0 // pred_check_branch
    %13 = sbr.rel (0) target = $region5
  $region4: #{bertcnn_forward.1} parent=0 // pred_region
    _
  $region5: #{bertcnn_forward.1} parent=0 // pred_fallthru
    _
  // Predicated region
  $region6: #{bertcnn_forward.1} parent=0 // pred_check
    _
  $region7: #{bertcnn_forward.1} parent=0 // pred_check_branch
    %15 = sbr.rel (0) target = $region9
  $region8: #{bertcnn_forward.1} parent=0 // pred_region
    _
  $region9: #{bertcnn_forward.1} parent=0 // pred_fallthru
    _
  // Predicated region
  $region10: #{bertcnn_forward.1} parent=0 // pred_check
    _
  $region11: #{bertcnn_forward.1} parent=0 // pred_check_branch
    %17 = sbr.rel (0) target = $region13
  $region12: #{bertcnn_forward.1} parent=0 // pred_region
    _
  $region13: #{bertcnn_forward.1} parent=0 // pred_fallthru
    _
  // Predicated region
  $region14: #{bertcnn_forward.1} parent=0 // pred_check
    _
  $region15: #{bertcnn_forward.1} parent=0 // pred_check_branch
    %19 = sbr.rel (0) target = $region17
  $region16: #{bertcnn_forward.1} parent=0 // pred_region
    _
  $region17: #{bertcnn_forward.1} parent=0 // pred_fallthru
    _
  // Predicated region
  $region18: #{bertcnn_forward.1} parent=0 // pred_check
    _
  $region19: #{bertcnn_forward.1} parent=0 // pred_check_branch
    %21 = sbr.rel (0) target = $region21
  $region20: #{bertcnn_forward.1} parent=0 // pred_region
    _
  $region21: #{bertcnn_forward.1} parent=0 // pred_fallthru
    _
  %v23 = vld [vmem:[%s0] sm:$0xff]
  %v24 = vld [vmem:[%s0 + $0x8] sm:$0xff]
  %v25 = vpack.c.bf16 %v24, %v23
  %v26 = vld [vmem:[%s1] sm:$0xff]
  %v27 = vld [vmem:[%s1 + $0x8] sm:$0xff]
  %v28 = vld [vmem:[%s1 + $0x10] sm:$0xff]
  %v29 = vld [vmem:[%s1 + $0x18] sm:$0xff]
  %v30 = vld [vmem:[%s1 + $0x20] sm:$0xf]
  %v31 = vld [vmem:[%s1 + $0x24] sm:$0xff]
  %v32 = vld [vmem:[%s1 + $0x2c] sm:$0xff]
  %v33 = vld [vmem:[%s1 + $0x34] sm:$0xff]
  %v34 = vld [vmem:[%s1 + $0x3c] sm:$0xff]
  %v35 = vld [vmem:[%s1 + $0x44] sm:$0xf]
  %v36 = vld [vmem:[%s1 + $0x48] sm:$0xff]
  %v37 = vld [vmem:[%s1 + $0x50] sm:$0xff]
  %v38 = vld [vmem:[%s1 + $0x58] sm:$0xff]
  %v39 = vld [vmem:[%s1 + $0x60] sm:$0xff]
  %v40 = vld [vmem:[%s1 + $0x68] sm:$0xf]
  %v41 = vld [vmem:[%s1 + $0x6c] sm:$0xff]
  %v42 = vld [vmem:[%s1 + $0x74] sm:$0xff]
  %v43 = vld [vmem:[%s1 + $0x7c] sm:$0xff]
  %v44 = vld [vmem:[%s1 + $0x84] sm:$0xff]
  %v45 = vld [vmem:[%s1 + $0x8c] sm:$0xf]
  %v66 = vunpack.c.l.b16 %v26
  %v67 = vunpack.c.h.b16 %v26
  %v68 = vunpack.c.l.b16 %v27
  %v69 = vunpack.c.h.b16 %v27
  %v70 = vunpack.c.l.b16 %v28
  %v71 = vunpack.c.h.b16 %v28
  %v72 = vunpack.c.l.b16 %v29
  %v73 = vunpack.c.h.b16 %v29
  %v74 = vunpack.c.l.b16 %v30
  %v75 = vunpack.c.l.b16 %v31
  %v76 = vunpack.c.h.b16 %v31
  %v77 = vunpack.c.l.b16 %v32
  %v78 = vunpack.c.h.b16 %v32
  %v79 = vunpack.c.l.b16 %v33
  %v80 = vunpack.c.h.b16 %v33
  %v81 = vunpack.c.l.b16 %v34
  %v82 = vunpack.c.h.b16 %v34
  %v83 = vunpack.c.l.b16 %v35
  %v84 = vunpack.c.l.b16 %v36
  %v85 = vunpack.c.h.b16 %v36
  %v86 = vunpack.c.l.b16 %v37
  %v87 = vunpack.c.h.b16 %v37
  %v88 = vunpack.c.l.b16 %v38
  %v89 = vunpack.c.h.b16 %v38
  %v90 = vunpack.c.l.b16 %v39
  %v91 = vunpack.c.h.b16 %v39
  %v92 = vunpack.c.l.b16 %v40
  %v93 = vunpack.c.l.b16 %v41
  %v94 = vunpack.c.h.b16 %v41
  %v95 = vunpack.c.l.b16 %v42
  %v96 = vunpack.c.h.b16 %v42
  %v97 = vunpack.c.l.b16 %v43
  %v98 = vunpack.c.h.b16 %v43
  %v99 = vunpack.c.l.b16 %v44
  %v100 = vunpack.c.h.b16 %v44
  %v101 = vunpack.c.l.b16 %v45
  %v102 = vpack.c.b16 %v75, %v66
  %v103 = vpack.c.b16 %v76, %v67
  %v104 = vpack.c.b16 %v77, %v68
  %v105 = vpack.c.b16 %v78, %v69
  %v106 = vpack.c.b16 %v79, %v70
  %v107 = vpack.c.b16 %v80, %v71
  %v108 = vpack.c.b16 %v81, %v72
  %v109 = vpack.c.b16 %v82, %v73
  %v110 = vpack.c.b16 %v83, %v74
  %v111 = vpack.c.b16 %v93, %v84
  %v112 = vpack.c.b16 %v94, %v85
  %v113 = vpack.c.b16 %v95, %v86
  %v114 = vpack.c.b16 %v96, %v87
  %v115 = vpack.c.b16 %v97, %v88
  %v116 = vpack.c.b16 %v98, %v89
  %v117 = vpack.c.b16 %v99, %v90
  %v118 = vpack.c.b16 %v100, %v91
  %v119 = vpack.c.b16 %v101, %v92
  %vm138 = vcmask 261120
  %v140 = vsel %vm138, %v25, 0
  %142 = vmatprep.subr.bf16.mxu0 %v103
  %143 = vmatpush1.bf16.msra.mxu0 %v102
  %144 = vmatprep.subr.bf16.mxu0 %v112
  %145 = vmatpush1.bf16.msra.mxu0 %v111
  %146 = vmatprep.subr.bf16.mxu0 0
  %147 = vmatpush1.bf16.msra.mxu0 0
  %148 = vmatprep.subr.bf16.mxu0 0
  %149 = vmatpush1.bf16.msra.mxu0 0
  %150 = vmatprep.subr.bf16.mxu0 0
  %151 = vmatpush1.bf16.msra.mxu0 0
  %152 = vmatprep.subr.bf16.mxu0 0
  %153 = vmatpush1.bf16.msra.mxu0 0
  %154 = vmatprep.subr.bf16.mxu0 0
  %155 = vmatpush1.bf16.msra.mxu0 0
  %156 = vmatprep.subr.bf16.mxu0 0
  %157 = vmatpush1.bf16.msra.mxu0 0
  %158 = vmatprep.subr.bf16.mxu0 0
  %159 = vmatpush1.bf16.msra.mxu0 0
  %160 = vmatprep.subr.bf16.mxu0 0
  %161 = vmatpush1.bf16.msra.mxu0 0
  %162 = vmatprep.subr.bf16.mxu0 0
  %163 = vmatpush1.bf16.msra.mxu0 0
  %164 = vmatprep.subr.bf16.mxu0 0
  %165 = vmatpush1.bf16.msra.mxu0 0
  %166 = vmatprep.subr.bf16.mxu0 0
  %167 = vmatpush1.bf16.msra.mxu0 0
  %168 = vmatprep.subr.bf16.mxu0 0
  %169 = vmatpush1.bf16.msra.mxu0 0
  %170 = vmatprep.subr.bf16.mxu0 0
  %171 = vmatpush1.bf16.msra.mxu0 0
  %172 = vmatprep.subr.bf16.mxu0 0
  %173 = vmatpush1.bf16.msra.mxu0 0
  %174 = vmatprep.mubr.bf16.mxu0 0
  %175 = vmatmul.mubr.bf16.gmra.mrb[0].mxu0 %v140
  %v176 = vpop.f32.mrb[0].mxu0
  %v177 = vadd.f32 0.0, %v176
  %v178 = vpop.f32.mrb[0].mxu0
  %v179 = vadd.f32 0.0, %v178
  %v180 = vpop.f32.mrb[0].mxu0
  %v181 = vadd.f32 0.0, %v180
  %v182 = vpop.f32.mrb[0].mxu0
  %v183 = vadd.f32 0.0, %v182
  %184 = vdwg.mxu0
  %185 = vmatprep.subr.bf16.mxu0 %v105
  %186 = vmatpush1.bf16.msra.mxu0 %v104
  %187 = vmatprep.subr.bf16.mxu0 %v114
  %188 = vmatpush1.bf16.msra.mxu0 %v113
  %189 = vmatprep.subr.bf16.mxu0 0
  %190 = vmatpush1.bf16.msra.mxu0 0
  %191 = vmatprep.subr.bf16.mxu0 0
  %192 = vmatpush1.bf16.msra.mxu0 0
  %193 = vmatprep.subr.bf16.mxu0 0
  %194 = vmatpush1.bf16.msra.mxu0 0
  %195 = vmatprep.subr.bf16.mxu0 0
  %196 = vmatpush1.bf16.msra.mxu0 0
  %197 = vmatprep.subr.bf16.mxu0 0
  %198 = vmatpush1.bf16.msra.mxu0 0
  %199 = vmatprep.subr.bf16.mxu0 0
  %200 = vmatpush1.bf16.msra.mxu0 0
  %201 = vmatprep.subr.bf16.mxu0 0
  %202 = vmatpush1.bf16.msra.mxu0 0
  %203 = vmatprep.subr.bf16.mxu0 0
  %204 = vmatpush1.bf16.msra.mxu0 0
  %205 = vmatprep.subr.bf16.mxu0 0
  %206 = vmatpush1.bf16.msra.mxu0 0
  %207 = vmatprep.subr.bf16.mxu0 0
  %208 = vmatpush1.bf16.msra.mxu0 0
  %209 = vmatprep.subr.bf16.mxu0 0
  %210 = vmatpush1.bf16.msra.mxu0 0
  %211 = vmatprep.subr.bf16.mxu0 0
  %212 = vmatpush1.bf16.msra.mxu0 0
  %213 = vmatprep.subr.bf16.mxu0 0
  %214 = vmatpush1.bf16.msra.mxu0 0
  %215 = vmatprep.subr.bf16.mxu0 0
  %216 = vmatpush1.bf16.msra.mxu0 0
  %217 = vmatprep.mubr.bf16.mxu0 0
  %218 = vmatmul.mubr.bf16.gmra.mrb[0].mxu0 %v140
  %v219 = vpop.f32.mrb[0].mxu0
  %v220 = vadd.f32 0.0, %v219
  %v221 = vpop.f32.mrb[0].mxu0
  %v222 = vadd.f32 0.0, %v221
  %v223 = vpop.f32.mrb[0].mxu0
  %v224 = vadd.f32 0.0, %v223
  %v225 = vpop.f32.mrb[0].mxu0
  %v226 = vadd.f32 0.0, %v225
  %227 = vdwg.mxu0
  %228 = vmatprep.subr.bf16.mxu0 %v107
  %229 = vmatpush1.bf16.msra.mxu0 %v106
  %230 = vmatprep.subr.bf16.mxu0 %v116
  %231 = vmatpush1.bf16.msra.mxu0 %v115
  %232 = vmatprep.subr.bf16.mxu0 0
  %233 = vmatpush1.bf16.msra.mxu0 0
  %234 = vmatprep.subr.bf16.mxu0 0
  %235 = vmatpush1.bf16.msra.mxu0 0
  %236 = vmatprep.subr.bf16.mxu0 0
  %237 = vmatpush1.bf16.msra.mxu0 0
  %238 = vmatprep.subr.bf16.mxu0 0
  %239 = vmatpush1.bf16.msra.mxu0 0
  %240 = vmatprep.subr.bf16.mxu0 0
  %241 = vmatpush1.bf16.msra.mxu0 0
  %242 = vmatprep.subr.bf16.mxu0 0
  %243 = vmatpush1.bf16.msra.mxu0 0
  %244 = vmatprep.subr.bf16.mxu0 0
  %245 = vmatpush1.bf16.msra.mxu0 0
  %246 = vmatprep.subr.bf16.mxu0 0
  %247 = vmatpush1.bf16.msra.mxu0 0
  %248 = vmatprep.subr.bf16.mxu0 0
  %249 = vmatpush1.bf16.msra.mxu0 0
  %250 = vmatprep.subr.bf16.mxu0 0
  %251 = vmatpush1.bf16.msra.mxu0 0
  %252 = vmatprep.subr.bf16.mxu0 0
  %253 = vmatpush1.bf16.msra.mxu0 0
  %254 = vmatprep.subr.bf16.mxu0 0
  %255 = vmatpush1.bf16.msra.mxu0 0
  %256 = vmatprep.subr.bf16.mxu0 0
  %257 = vmatpush1.bf16.msra.mxu0 0
  %258 = vmatprep.subr.bf16.mxu0 0
  %259 = vmatpush1.bf16.msra.mxu0 0
  %260 = vmatprep.mubr.bf16.mxu0 0
  %261 = vmatmul.mubr.bf16.gmra.mrb[0].mxu0 %v140
  %v262 = vpop.f32.mrb[0].mxu0
  %v263 = vadd.f32 0.0, %v262
  %v264 = vpop.f32.mrb[0].mxu0
  %v265 = vadd.f32 0.0, %v264
  %v266 = vpop.f32.mrb[0].mxu0
  %v267 = vadd.f32 0.0, %v266
  %v268 = vpop.f32.mrb[0].mxu0
  %v269 = vadd.f32 0.0, %v268
  %270 = vdwg.mxu0
  %271 = vmatprep.subr.bf16.mxu0 %v109
  %272 = vmatpush1.bf16.msra.mxu0 %v108
  %273 = vmatprep.subr.bf16.mxu0 %v118
  %274 = vmatpush1.bf16.msra.mxu0 %v117
  %275 = vmatprep.subr.bf16.mxu0 0
  %276 = vmatpush1.bf16.msra.mxu0 0
  %277 = vmatprep.subr.bf16.mxu0 0
  %278 = vmatpush1.bf16.msra.mxu0 0
  %279 = vmatprep.subr.bf16.mxu0 0
  %280 = vmatpush1.bf16.msra.mxu0 0
  %281 = vmatprep.subr.bf16.mxu0 0
  %282 = vmatpush1.bf16.msra.mxu0 0
  %283 = vmatprep.subr.bf16.mxu0 0
  %284 = vmatpush1.bf16.msra.mxu0 0
  %285 = vmatprep.subr.bf16.mxu0 0
  %286 = vmatpush1.bf16.msra.mxu0 0
  %287 = vmatprep.subr.bf16.mxu0 0
  %288 = vmatpush1.bf16.msra.mxu0 0
  %289 = vmatprep.subr.bf16.mxu0 0
  %290 = vmatpush1.bf16.msra.mxu0 0
  %291 = vmatprep.subr.bf16.mxu0 0
  %292 = vmatpush1.bf16.msra.mxu0 0
  %293 = vmatprep.subr.bf16.mxu0 0
  %294 = vmatpush1.bf16.msra.mxu0 0
  %295 = vmatprep.subr.bf16.mxu0 0
  %296 = vmatpush1.bf16.msra.mxu0 0
  %297 = vmatprep.subr.bf16.mxu0 0
  %298 = vmatpush1.bf16.msra.mxu0 0
  %299 = vmatprep.subr.bf16.mxu0 0
  %300 = vmatpush1.bf16.msra.mxu0 0
  %301 = vmatprep.subr.bf16.mxu0 0
  %302 = vmatpush1.bf16.msra.mxu0 0
  %303 = vmatprep.mubr.bf16.mxu0 0
  %304 = vmatmul.mubr.bf16.gmra.mrb[0].mxu0 %v140
  %v305 = vpop.f32.mrb[0].mxu0
  %v306 = vadd.f32 0.0, %v305
  %v307 = vpop.f32.mrb[0].mxu0
  %v308 = vadd.f32 0.0, %v307
  %v309 = vpop.f32.mrb[0].mxu0
  %v310 = vadd.f32 0.0, %v309
  %v311 = vpop.f32.mrb[0].mxu0
  %v312 = vadd.f32 0.0, %v311
  %313 = vdwg.mxu0
  %314 = vmatprep.subr.bf16.mxu0 0
  %315 = vmatpush1.bf16.msra.mxu0 %v110
  %316 = vmatprep.subr.bf16.mxu0 0
  %317 = vmatpush1.bf16.msra.mxu0 %v119
  %318 = vmatprep.subr.bf16.mxu0 0
  %319 = vmatpush1.bf16.msra.mxu0 0
  %320 = vmatprep.subr.bf16.mxu0 0
  %321 = vmatpush1.bf16.msra.mxu0 0
  %322 = vmatprep.subr.bf16.mxu0 0
  %323 = vmatpush1.bf16.msra.mxu0 0
  %324 = vmatprep.subr.bf16.mxu0 0
  %325 = vmatpush1.bf16.msra.mxu0 0
  %326 = vmatprep.subr.bf16.mxu0 0
  %327 = vmatpush1.bf16.msra.mxu0 0
  %328 = vmatprep.subr.bf16.mxu0 0
  %329 = vmatpush1.bf16.msra.mxu0 0
  %330 = vmatprep.subr.bf16.mxu0 0
  %331 = vmatpush1.bf16.msra.mxu0 0
  %332 = vmatprep.subr.bf16.mxu0 0
  %333 = vmatpush1.bf16.msra.mxu0 0
  %334 = vmatprep.subr.bf16.mxu0 0
  %335 = vmatpush1.bf16.msra.mxu0 0
  %336 = vmatprep.subr.bf16.mxu0 0
  %337 = vmatpush1.bf16.msra.mxu0 0
  %338 = vmatprep.subr.bf16.mxu0 0
  %339 = vmatpush1.bf16.msra.mxu0 0
  %340 = vmatprep.subr.bf16.mxu0 0
  %341 = vmatpush1.bf16.msra.mxu0 0
  %342 = vmatprep.subr.bf16.mxu0 0
  %343 = vmatpush1.bf16.msra.mxu0 0
  %344 = vmatprep.subr.bf16.mxu0 0
  %345 = vmatpush1.bf16.msra.mxu0 0
  %346 = vmatprep.mubr.bf16.mxu0 0
  %347 = vmatmul.mubr.bf16.gmra.mrb[0].mxu0 %v140
  %v348 = vpop.f32.mrb[0].mxu0
  %v349 = vadd.f32 0.0, %v348
  %v350 = vpop.f32.mrb[0].mxu0
  %v351 = vpop.f32.mrb[0].mxu0
  %v352 = vadd.f32 0.0, %v351
  %v353 = vpop.f32.mrb[0].mxu0
  %354 = vdwg.mxu0
  %v355 = vlaneseq
  %v356 = vshrl.u32 %v355, 7
  %v357 = vrot.slane %v179, 1
  %v358 = vrot.slane %v183, 1
  %vm359 = vcmp.lt.s32.totalorder %v356, 7
  %v360 = vsel %vm359, %v357, %v358
  %v361 = vsel %vm359, %v358, %v357
  %v362 = vadd.f32 %v177, %v360
  %v363 = vadd.f32 %v181, %v361
  %v364 = vld [vmem:[%s2] sm:$0x1]
  %v365 = vlaneseq
  %v366 = vshrl.u32 %v365, 7
  %v367 = vsub.s32 0, %v366
  %v368 = vrot.slane %v364, %v367
  %v369 = vadd.f32 %v362, %v368
  %v370 = vadd.f32 %v363, %v368
  %v371 = vmax.f32 %v369, 0.0
  %v372 = vmax.f32 %v370, 0.0
  %v373 = vsel %vm359, 1, 0
  %vm374 = vcmp.eq.s32.totalorder %v373, 1
  %v375 = vsel %vm374, %v371, 0.0
  %v376 = vsel %vm374, %v372, 0.0
  %v377 = vrot.slane %v375, 4
  %v378 = vmax.f32 %v375, %v377
  %v379 = vrot.slane %v378, 2
  %v380 = vmax.f32 %v378, %v379
  %v381 = vrot.slane %v380, 1
  %v382 = vmax.f32 %v380, %v381
  %v383 = vrot.slane %v376, 4
  %v384 = vmax.f32 %v376, %v383
  %v385 = vrot.slane %v384, 2
  %v386 = vmax.f32 %v384, %v385
  %v387 = vrot.slane %v386, 1
  %v388 = vmax.f32 %v386, %v387
  %v389 = vld [vmem:[%s3] sm:$0x1]
  %v390 = vlaneseq
  %v391 = vshrl.u32 %v390, 7
  %v392 = vsub.s32 0, %v391
  %v393 = vrot.slane %v389, %v392
  %v394 = vmul.f32 %v382, %v393
  %v395 = vmul.f32 %v388, %v393
  %v398 = vrot.slane %v395, 7
  %vm399 = vcmask 1041409
  %v400 = vsel %vm399, %v398, %v394
  %vm402 = vcmask 1041408
  %v403 = vsel %vm402, %v400, 0.0
  %404 = vadd.xlane.f32.xlu0 %v403
  %v405 = vpop.xlane.xlu0 %404
  %v406 = vrot.slane %v222, 1
  %v407 = vrot.slane %v226, 1
  %v408 = vsel %vm359, %v406, %v407
  %v409 = vsel %vm359, %v407, %v406
  %v410 = vadd.f32 %v220, %v408
  %v411 = vadd.f32 %v224, %v409
  %v412 = vrot.slane %v263, 2
  %v413 = vrot.slane %v267, 2
  %vm414 = vcmp.lt.s32.totalorder %v356, 6
  %v415 = vsel %vm414, %v412, %v413
  %v416 = vsel %vm414, %v413, %v412
  %v417 = vadd.f32 %v410, %v415
  %v418 = vadd.f32 %v411, %v416
  %v419 = vld [vmem:[%s2 + $0x1] sm:$0x1]
  %v420 = vlaneseq
  %v421 = vshrl.u32 %v420, 7
  %v422 = vsub.s32 0, %v421
  %v423 = vrot.slane %v419, %v422
  %v424 = vadd.f32 %v417, %v423
  %v425 = vadd.f32 %v418, %v423
  %v426 = vmax.f32 %v424, 0.0
  %v427 = vmax.f32 %v425, 0.0
  %v428 = vsel %vm414, 1, 0
  %vm429 = vcmp.eq.s32.totalorder %v428, 1
  %v430 = vsel %vm429, %v426, 0.0
  %v431 = vsel %vm429, %v427, 0.0
  %v432 = vrot.slane %v430, 4
  %v433 = vmax.f32 %v430, %v432
  %v434 = vrot.slane %v433, 2
  %v435 = vmax.f32 %v433, %v434
  %v436 = vrot.slane %v435, 1
  %v437 = vmax.f32 %v435, %v436
  %v438 = vrot.slane %v431, 4
  %v439 = vmax.f32 %v431, %v438
  %v440 = vrot.slane %v439, 2
  %v441 = vmax.f32 %v439, %v440
  %v442 = vrot.slane %v441, 1
  %v443 = vmax.f32 %v441, %v442
  %v444 = vld [vmem:[%s3 + $0x1] sm:$0x1]
  %v445 = vlaneseq
  %v446 = vshrl.u32 %v445, 7
  %v447 = vsub.s32 0, %v446
  %v448 = vrot.slane %v444, %v447
  %v449 = vmul.f32 %v437, %v448
  %v450 = vmul.f32 %v443, %v448
  %v453 = vrot.slane %v450, 7
  %v454 = vsel %vm399, %v453, %v449
  %v456 = vsel %vm402, %v454, 0.0
  %457 = vadd.xlane.f32.xlu0 %v456
  %v458 = vpop.xlane.xlu0 %457
  %v459 = vadd.f32 %v405, %v458
  %v460 = vrot.slane %v306, 1
  %v461 = vrot.slane %v310, 1
  %v462 = vsel %vm359, %v460, %v461
  %v463 = vsel %vm359, %v461, %v460
  %v464 = vadd.f32 %v265, %v462
  %v465 = vadd.f32 %v269, %v463
  %v466 = vrot.slane %v308, 2
  %v467 = vrot.slane %v312, 2
  %v468 = vsel %vm414, %v466, %v467
  %v469 = vsel %vm414, %v467, %v466
  %v470 = vadd.f32 %v464, %v468
  %v471 = vadd.f32 %v465, %v469
  %v472 = vrot.slane %v349, 3
  %v473 = vrot.slane %v352, 3
  %vm474 = vcmp.lt.s32.totalorder %v356, 5
  %v475 = vsel %vm474, %v472, %v473
  %v476 = vsel %vm474, %v473, %v472
  %v477 = vadd.f32 %v470, %v475
  %v478 = vadd.f32 %v471, %v476
  %v479 = vld [vmem:[%s2 + $0x2] sm:$0x1]
  %v480 = vlaneseq
  %v481 = vshrl.u32 %v480, 7
  %v482 = vsub.s32 0, %v481
  %v483 = vrot.slane %v479, %v482
  %v484 = vadd.f32 %v477, %v483
  %v485 = vadd.f32 %v478, %v483
  %v486 = vmax.f32 %v484, 0.0
  %v487 = vmax.f32 %v485, 0.0
  %v488 = vsel %vm474, 1, 0
  %vm489 = vcmp.eq.s32.totalorder %v488, 1
  %v490 = vsel %vm489, %v486, 0.0
  %v491 = vsel %vm489, %v487, 0.0
  %v492 = vrot.slane %v490, 4
  %v493 = vmax.f32 %v490, %v492
  %v494 = vrot.slane %v493, 2
  %v495 = vmax.f32 %v493, %v494
  %v496 = vrot.slane %v495, 1
  %v497 = vmax.f32 %v495, %v496
  %v498 = vrot.slane %v491, 4
  %v499 = vmax.f32 %v491, %v498
  %v500 = vrot.slane %v499, 2
  %v501 = vmax.f32 %v499, %v500
  %v502 = vrot.slane %v501, 1
  %v503 = vmax.f32 %v501, %v502
  %v504 = vld [vmem:[%s3 + $0x2] sm:$0x1]
  %v505 = vlaneseq
  %v506 = vshrl.u32 %v505, 7
  %v507 = vsub.s32 0, %v506
  %v508 = vrot.slane %v504, %v507
  %v509 = vmul.f32 %v497, %v508
  %v510 = vmul.f32 %v503, %v508
  %v513 = vrot.slane %v510, 7
  %v514 = vsel %vm399, %v513, %v509
  %v516 = vsel %vm402, %v514, 0.0
  %517 = vadd.xlane.f32.xlu0 %v516
  %v518 = vpop.xlane.xlu0 %517
  %v519 = vadd.f32 %v459, %v518
  %v520 = vld [vmem:[#allocation2] sm:$0x1]
  %v522 = vlaneseq
  %v523 = vshrl.u32 %v522, 7
  %v524 = vsub.s32 0, %v523
  %v525 = vrot.slane %v520, %v524
  %v527 = vadd.f32 %v519, %v525
  %v528 = vxor.u32 %v527, 2147483648
  %v529 = vmul.f32 %v528, 1.442695
  %v530 = vpow.pop %v529
  %v531 = vadd.f32 %v530, 1.0
  %v532 = vrcp.pop %v531
  %v533 = vmul.f32 1.0, %v532
  %vm534 = vcmask 1024
  %535 = vst.msk [vmem:[%s5] sm:$0x3] %vm534, %v533
  // Predicated region
  $region22: #{bertcnn_forward.1} parent=0 // pred_check
    _
  $region23: #{bertcnn_forward.1} parent=0 // pred_check_branch
    %537 = sbr.rel (0) target = $region25
  $region24: #{bertcnn_forward.1} parent=0 // pred_region
    _
  $region25: #{bertcnn_forward.1} parent=0 // pred_fallthru
    _
  // Predicated region
  $region26: #{bertcnn_forward.1} parent=0 // pred_check
    _
  $region27: #{bertcnn_forward.1} parent=0 // pred_check_branch
    %539 = sbr.rel (0) target = $region29
  $region28: #{bertcnn_forward.1} parent=0 // pred_region
    _
  $region29: #{bertcnn_forward.1} parent=0 // pred_fallthru
    _

</llo_original>
